<compile_context>
chip_gen: v7x
topology: tpu7x:2x2x1
jax: 0.10.0
libtpu: 0.0.40
codegen_flags: <defaults>
</compile_context>

<pallas_src>
import functools

import jax
import jax.numpy as jnp
from jax.experimental import pallas as pl
from jax.experimental.pallas import tpu as pltpu

_LANE = 128


def _tts_adapter_mlp_kernel(x_ref, wgu_ref, wd_ref, o_ref, *, i_pad):
    # x_ref   : (tm, H)          activations for this token tile (streams)
    # wgu_ref : (H, 2*I_pad)     fused [gate | up], (in, out) layout, VMEM-resident
    # wd_ref  : (I_pad, H_pad)   down_proj, (in, out) layout, VMEM-resident
    # o_ref   : (tm, H_pad)      lane-dense output tile
    x = x_ref[...]

    # Single fused matmul for gate_proj and up_proj (MXU-native orientation).
    gu = jnp.dot(x, wgu_ref[...], preferred_element_type=jnp.float32)  # (tm, 2*I_pad)
    gate = gu[:, :i_pad]
    up = gu[:, i_pad:]

    # SiLU(gate) * up in f32 (sigmoid's exp runs on the EUP).
    hidden = (gate * jax.nn.sigmoid(gate)) * up                        # (tm, I_pad) f32

    out = jnp.dot(hidden.astype(wd_ref.dtype), wd_ref[...],
                  preferred_element_type=jnp.float32)                  # (tm, H_pad) f32
    o_ref[...] = out.astype(o_ref.dtype)


def tts_adapter_mlp(x, gate_w, up_w, down_w, *, tm=None):
    """down_proj(silu(gate_proj(x)) * up_proj(x)).

    x: (batch, seq, H).  Weights in PyTorch (out_features, in_features) layout:
    gate_w/up_w: (I, H), down_w: (H, I).  mlp_bias=False, hidden_act="silu",
    pretraining_tp == 1 (the tp>1 branch is numerically identical).
    Works unchanged for bf16 inputs/weights (accumulation stays f32).
    """
    b, s, h = x.shape
    inter = gate_w.shape[0]
    assert gate_w.shape == (inter, h)
    assert up_w.shape == (inter, h)
    assert down_w.shape == (h, inter)

    t = b * s
    x2 = x.reshape(t, h)

    # ---- One-time weight re-layout (amortized over all token tiles). --------
    # Lane-pad I and the *output* H to multiples of 128 so the hidden slab and
    # the output stores are lane-dense; padded rows/cols are zeros and are
    # mathematically inert.  x / the contraction H are NOT padded.
    i_pad = pl.cdiv(inter, _LANE) * _LANE
    h_pad = pl.cdiv(h, _LANE) * _LANE

    gate_t = jnp.pad(gate_w.T, ((0, 0), (0, i_pad - inter)))            # (H, I_pad)
    up_t = jnp.pad(up_w.T, ((0, 0), (0, i_pad - inter)))                # (H, I_pad)
    wgu = jnp.concatenate([gate_t, up_t], axis=1)                       # (H, 2*I_pad)
    wd = jnp.pad(down_w.T, ((0, i_pad - inter), (0, h_pad - h)))        # (I_pad, H_pad)

    # ---- Token-tile size from a conservative VMEM budget. --------------------
    x_item = jnp.dtype(x.dtype).itemsize
    w_bytes = wgu.size * wgu.dtype.itemsize + wd.size * wd.dtype.itemsize
    # Per-token VMEM: 2 streaming x buffers + 2 streaming out buffers
    # + f32 gu / hidden / out temporaries inside the kernel.
    per_tok = (2 * h * x_item + 2 * h_pad * x_item
               + (2 * i_pad + i_pad + h_pad) * 4)
    sub = 16 if x.dtype == jnp.bfloat16 else 8
    if tm is None:
        budget = 40 << 20  # conservative: fits v7x's 64 MiB/TC with headroom
        avail = budget - 2 * w_bytes
        tm = (avail // per_tok) if avail > 0 else sub
        tm = int(min(max(tm, sub), 4096))
    tm = max(sub, (int(tm) // sub) * sub)          # sublane multiple
    tm = min(tm, pl.cdiv(t, sub) * sub)            # don't exceed (rounded) tokens
    if tm >= 128:
        tm = (tm // 128) * 128                     # MXU-friendly M for big tiles

    grid_steps = pl.cdiv(t, tm)                    # ragged last tile: writes masked

    need = 2 * w_bytes + tm * per_tok + (2 << 20)
    vmem_limit = int(min(max(need, 16 << 20), 52 << 20))

    cost = pl.CostEstimate(
        flops=2 * t * h * (2 * i_pad) + 2 * t * i_pad * h_pad,
        transcendentals=t * i_pad,
        bytes_accessed=t * h * x_item + t * h_pad * x_item + w_bytes,
    )

    kernel = functools.partial(_tts_adapter_mlp_kernel, i_pad=i_pad)

    def _invoke(weight_pipeline_mode):
        wkw = ({} if weight_pipeline_mode is None
               else {"pipeline_mode": weight_pipeline_mode})
        return pl.pallas_call(
            kernel,
            out_shape=jax.ShapeDtypeStruct((t, h_pad), x.dtype),
            grid=(grid_steps,),
            in_specs=[
                pl.BlockSpec((tm, h), lambda n: (n, 0)),                # x streams
                pl.BlockSpec((h, 2 * i_pad), lambda n: (0, 0), **wkw),  # fused gate|up
                pl.BlockSpec((i_pad, h_pad), lambda n: (0, 0), **wkw),  # down
            ],
            out_specs=pl.BlockSpec((tm, h_pad), lambda n: (n, 0)),
            compiler_params=pltpu.CompilerParams(
                dimension_semantics=("parallel",),
                vmem_limit_bytes=vmem_limit,
            ),
            cost_estimate=cost,
        )(x2, wgu, wd)

    try:
        # Grid-invariant weights: single VMEM buffer (saves one weight copy).
        out2d = _invoke(pl.Buffered(1))
    except Exception:
        # TODO(synk): drop this fallback once single-buffered invariant inputs
        # (pl.Buffered(1)) are guaranteed by the deployed jax; default double
        # buffering is correct, it just keeps one extra weight copy in VMEM.
        out2d = _invoke(None)

    if h_pad != h:
        out2d = out2d[:, :h]
    return out2d.reshape(b, s, h)


def _reference(x, gate_w, up_w, down_w):
    g = x @ gate_w.T
    u = x @ up_w.T
    return ((g * jax.nn.sigmoid(g)) * u) @ down_w.T


if __name__ == "__main__":
    # Small config: batch=2, seq=8, tts_adapter_hidden_size=32,
    # tts_adapter_intermediate_size=64, mlp_bias=False, hidden_act="silu".
    batch, seq, hidden, inter = 2, 8, 32, 64
    key = jax.random.PRNGKey(0)
    kx, kg, ku, kd = jax.random.split(key, 4)

    x = jax.random.normal(kx, (batch, seq, hidden), dtype=jnp.float32)
    # Deterministic weights in PyTorch (out_features, in_features) layout.
    gate_w = jax.random.normal(kg, (inter, hidden), dtype=jnp.float32) * 0.05
    up_w = jax.random.normal(ku, (inter, hidden), dtype=jnp.float32) * 0.05
    down_w = jax.random.normal(kd, (hidden, inter), dtype=jnp.float32) * 0.05

    ref = _reference(x, gate_w, up_w, down_w)
    # Tolerance accounts for TPU matmul precision defaults (f32 dots may run as
    # bf16 passes on the MXU); structural bugs produce errors >> this bound.
    ATOL, RTOL = 1e-3, 1e-2

    # Auto tile (single grid step for this tiny shape).
    out = tts_adapter_mlp(x, gate_w, up_w, down_w)
    jax.block_until_ready(out)
    assert out.shape == (batch, seq, hidden)
    assert jnp.allclose(out, ref, atol=ATOL, rtol=RTOL)

    # Multi-step token grid (2 tiles of 8 tokens).
    out2 = tts_adapter_mlp(x, gate_w, up_w, down_w, tm=8)
    jax.block_until_ready(out2)
    assert jnp.allclose(out2, ref, atol=ATOL, rtol=RTOL)

    # Ragged token count (13 tokens, tm=8 -> last tile's writes are masked).
    x_odd = x.reshape(1, batch * seq, hidden)[:, :13]
    out3 = tts_adapter_mlp(x_odd, gate_w, up_w, down_w, tm=8)
    jax.block_until_ready(out3)
    assert jnp.allclose(out3, _reference(x_odd, gate_w, up_w, down_w),
                        atol=ATOL, rtol=RTOL)

    print("KERNEL_OK")
</pallas_src>

<mosaic_0001>
module attributes {stable_mosaic.version = 11 : i64} {
  func.func @_tts_adapter_mlp_kernel(%arg0: i32, %arg1: memref<16x32xf32, #tpu.memory_space<vmem>>, %arg2: memref<32x256xf32, #tpu.memory_space<vmem>>, %arg3: memref<128x128xf32, #tpu.memory_space<vmem>>, %arg4: memref<16x128xf32, #tpu.memory_space<vmem>>) attributes {dimension_semantics = [#tpu.dimension_semantics<parallel>], iteration_bounds = array<i64: 1>, scalar_prefetch = 0 : i64, scratch_operands = 0 : i64, tpu.core_type = #tpu.core_type<tc>, window_params = [{transform_indices = @transform_0, window_bounds = array<i64: 16, 32>}, {pipeline_mode = #tpu.pipeline_mode<synchronous>, transform_indices = @transform_1, window_bounds = array<i64: 32, 256>}, {pipeline_mode = #tpu.pipeline_mode<synchronous>, transform_indices = @transform_2, window_bounds = array<i64: 128, 128>}, {transform_indices = @transform_3, window_bounds = array<i64: 16, 128>}]} {
    %c0 = arith.constant 0 : index
    %c0_0 = arith.constant 0 : index
    %0 = vector.load %arg1[%c0, %c0_0] : memref<16x32xf32, #tpu.memory_space<vmem>>, vector<16x32xf32>
    %c0_1 = arith.constant 0 : index
    %c0_2 = arith.constant 0 : index
    %1 = vector.load %arg2[%c0_1, %c0_2] : memref<32x256xf32, #tpu.memory_space<vmem>>, vector<32x256xf32>
    %cst = arith.constant dense<0.000000e+00> : vector<16x256xf32>
    %2 = tpu.matmul %0, %1, %cst {dimension_numbers = #tpu.dot_dimension_numbers<[1], [0], [0], [1], [0, 0, 1, 1], [], []>} : vector<16x32xf32>, vector<32x256xf32>, vector<16x256xf32> -> vector<16x256xf32>
    %3 = vector.extract_strided_slice %2 {offsets = [0, 0], sizes = [16, 128], strides = [1, 1]} : vector<16x256xf32> to vector<16x128xf32>
    %4 = vector.extract_strided_slice %2 {offsets = [0, 128], sizes = [16, 128], strides = [1, 1]} : vector<16x256xf32> to vector<16x128xf32>
    %5 = arith.negf %3 : vector<16x128xf32>
    %6 = math.exp %5 : vector<16x128xf32>
    %cst_3 = arith.constant 1.000000e+00 : f32
    %7 = vector.broadcast %cst_3 : f32 to vector<16x128xf32>
    %8 = arith.addf %7, %6 : vector<16x128xf32>
    %9 = arith.divf %7, %8 : vector<16x128xf32>
    %10 = arith.mulf %3, %9 : vector<16x128xf32>
    %11 = arith.mulf %10, %4 : vector<16x128xf32>
    %c0_4 = arith.constant 0 : index
    %c0_5 = arith.constant 0 : index
    %12 = vector.load %arg3[%c0_4, %c0_5] : memref<128x128xf32, #tpu.memory_space<vmem>>, vector<128x128xf32>
    %cst_6 = arith.constant dense<0.000000e+00> : vector<16x128xf32>
    %13 = tpu.matmul %11, %12, %cst_6 {dimension_numbers = #tpu.dot_dimension_numbers<[1], [0], [0], [1], [0, 0, 1, 1], [], []>} : vector<16x128xf32>, vector<128x128xf32>, vector<16x128xf32> -> vector<16x128xf32>
    %c0_7 = arith.constant 0 : index
    %c0_8 = arith.constant 0 : index
    %14 = vector.load %arg4[%c0_7, %c0_8] : memref<16x128xf32, #tpu.memory_space<vmem>>, vector<16x128xf32>
    tpu.vector_store %arg4[%c0_7, %c0_8], %13 {strides = array<i32>} : memref<16x128xf32, #tpu.memory_space<vmem>>, vector<16x128xf32>,
    return
  }
  func.func @transform_0(%arg0: i32) -> (i32, i32) {
    %c0_i32 = arith.constant 0 : i32
    %c0_i32_0 = arith.constant 0 : i32
    return %arg0, %c0_i32 : i32, i32
  }
  func.func @transform_1(%arg0: i32) -> (i32, i32) {
    %c0_i32 = arith.constant 0 : i32
    %c0_i32_0 = arith.constant 0 : i32
    %c0_i32_1 = arith.constant 0 : i32
    return %c0_i32, %c0_i32_0 : i32, i32
  }
  func.func @transform_2(%arg0: i32) -> (i32, i32) {
    %c0_i32 = arith.constant 0 : i32
    %c0_i32_0 = arith.constant 0 : i32
    %c0_i32_1 = arith.constant 0 : i32
    return %c0_i32, %c0_i32_0 : i32, i32
  }
  func.func @transform_3(%arg0: i32) -> (i32, i32) {
    %c0_i32 = arith.constant 0 : i32
    %c0_i32_0 = arith.constant 0 : i32
    return %arg0, %c0_i32 : i32, i32
  }
}

module attributes {stable_mosaic.version = 11 : i64} {
  func.func @_tts_adapter_mlp_kernel(%arg0: i32, %arg1: memref<16x32xf32, #tpu.memory_space<vmem>>, %arg2: memref<32x256xf32, #tpu.memory_space<vmem>>, %arg3: memref<128x128xf32, #tpu.memory_space<vmem>>, %arg4: memref<16x128xf32, #tpu.memory_space<vmem>>) attributes {dimension_semantics = [#tpu.dimension_semantics<parallel>], iteration_bounds = array<i64: 1>, scalar_prefetch = 0 : i64, scratch_operands = 0 : i64, tpu.core_type = #tpu.core_type<tc>, window_params = [{transform_indices = @transform_0, window_bounds = array<i64: 16, 32>}, {pipeline_mode = #tpu.pipeline_mode<synchronous>, transform_indices = @transform_1, window_bounds = array<i64: 32, 256>}, {pipeline_mode = #tpu.pipeline_mode<synchronous>, transform_indices = @transform_2, window_bounds = array<i64: 128, 128>}, {transform_indices = @transform_3, window_bounds = array<i64: 16, 128>}]} {
    %c0 = arith.constant 0 : index
    %c0_0 = arith.constant 0 : index
    %0 = vector.load %arg1[%c0, %c0_0] : memref<16x32xf32, #tpu.memory_space<vmem>>, vector<16x32xf32>
    %c0_1 = arith.constant 0 : index
    %c0_2 = arith.constant 0 : index
    %1 = vector.load %arg2[%c0_1, %c0_2] : memref<32x256xf32, #tpu.memory_space<vmem>>, vector<32x256xf32>
    %cst = arith.constant dense<0.000000e+00> : vector<16x256xf32>
    %2 = tpu.matmul %0, %1, %cst {dimension_numbers = #tpu.dot_dimension_numbers<[1], [0], [0], [1], [0, 0, 1, 1], [], []>} : vector<16x32xf32>, vector<32x256xf32>, vector<16x256xf32> -> vector<16x256xf32>
    %3 = vector.extract_strided_slice %2 {offsets = [0, 0], sizes = [16, 128], strides = [1, 1]} : vector<16x256xf32> to vector<16x128xf32>
    %4 = vector.extract_strided_slice %2 {offsets = [0, 128], sizes = [16, 128], strides = [1, 1]} : vector<16x256xf32> to vector<16x128xf32>
    %5 = arith.negf %3 : vector<16x128xf32>
    %6 = math.exp %5 : vector<16x128xf32>
    %cst_3 = arith.constant 1.000000e+00 : f32
    %7 = vector.broadcast %cst_3 : f32 to vector<16x128xf32>
    %8 = arith.addf %7, %6 : vector<16x128xf32>
    %9 = arith.divf %7, %8 : vector<16x128xf32>
    %10 = arith.mulf %3, %9 : vector<16x128xf32>
    %11 = arith.mulf %10, %4 : vector<16x128xf32>
    %c0_4 = arith.constant 0 : index
    %c0_5 = arith.constant 0 : index
    %12 = vector.load %arg3[%c0_4, %c0_5] : memref<128x128xf32, #tpu.memory_space<vmem>>, vector<128x128xf32>
    %cst_6 = arith.constant dense<0.000000e+00> : vector<16x128xf32>
    %13 = tpu.matmul %11, %12, %cst_6 {dimension_numbers = #tpu.dot_dimension_numbers<[1], [0], [0], [1], [0, 0, 1, 1], [], []>} : vector<16x128xf32>, vector<128x128xf32>, vector<16x128xf32> -> vector<16x128xf32>
    %c0_7 = arith.constant 0 : index
    %c0_8 = arith.constant 0 : index
    %14 = vector.load %arg4[%c0_7, %c0_8] : memref<16x128xf32, #tpu.memory_space<vmem>>, vector<16x128xf32>
    tpu.vector_store %arg4[%c0_7, %c0_8], %13 {strides = array<i32>} : memref<16x128xf32, #tpu.memory_space<vmem>>, vector<16x128xf32>,
    return
  }
  func.func @transform_0(%arg0: i32) -> (i32, i32) {
    %c0_i32 = arith.constant 0 : i32
    %c0_i32_0 = arith.constant 0 : i32
    return %arg0, %c0_i32 : i32, i32
  }
  func.func @transform_1(%arg0: i32) -> (i32, i32) {
    %c0_i32 = arith.constant 0 : i32
    %c0_i32_0 = arith.constant 0 : i32
    %c0_i32_1 = arith.constant 0 : i32
    return %c0_i32, %c0_i32_0 : i32, i32
  }
  func.func @transform_2(%arg0: i32) -> (i32, i32) {
    %c0_i32 = arith.constant 0 : i32
    %c0_i32_0 = arith.constant 0 : i32
    %c0_i32_1 = arith.constant 0 : i32
    return %c0_i32, %c0_i32_0 : i32, i32
  }
  func.func @transform_3(%arg0: i32) -> (i32, i32) {
    %c0_i32 = arith.constant 0 : i32
    %c0_i32_0 = arith.constant 0 : i32
    return %arg0, %c0_i32 : i32, i32
  }
}

</mosaic_0001>

<llo_original>
// kernel: tpu_custom_call.1
$region0: #{tpu_custom_call.1}
  #allocation0 [shape = 'u32[]', space=smem, size = 0x4, offset = 0x4, fixed_abs, tag = 'smem constant byte address 0x4 - core index']
  #allocation1 [shape = 'u32[144,128]{1,0:T(1,128)}', space=vmem, size = 0x12000, scoped, tag = 'internal scratch']
  %s0 = inlined_call_operand.hbm [shape: f32[16,32], index: 0, kind: input, shape index: {}]
  %s1 = inlined_call_operand.hbm [shape: f32[32,256], index: 1, kind: input, shape index: {}]
  %s2 = inlined_call_operand.hbm [shape: f32[128,128], index: 2, kind: input, shape index: {}]
  %s3 = inlined_call_operand.hbm [shape: f32[16,128], index: 3, kind: output, shape index: {}]
  %s4 = sld [smem:[#allocation0]]
  $region34: #{tpu_custom_call.1} parent=0
    _
  %s6 = ssub.s32 1, %s4
  %s7 = scalar_select 0, %s6, %s4
  $region1: #{tpu_custom_call.1} parent=0
    #allocation2 [shape = 'u8[8192]{0}', space=vmem, size = 0x2000, scoped, tag = 'input window, operand 0, single buffered']
    #allocation3 [shape = 's32[1]{0}', space=sflag, size = 0x4, scoped, tag = 'scoped memory for tpu_custom_call.1']
    #allocation4 [shape = 's32[1]{0}', space=sflag, size = 0x4, scoped, tag = 'scoped memory for tpu_custom_call.1']
    #allocation5 [shape = 'u8[32768]{0}', space=vmem, size = 0x8000, scoped, tag = 'input window, operand 1, single buffered']
    #allocation6 [shape = 's32[1]{0}', space=sflag, size = 0x4, scoped, tag = 'scoped memory for tpu_custom_call.1']
    #allocation7 [shape = 'u8[65536]{0}', space=vmem, size = 0x10000, scoped, tag = 'input window, operand 2, single buffered']
    #allocation8 [shape = 'u8[8192]{0}', space=vmem, size = 0x2000, scoped, tag = 'output window, operand 0, single buffered']
    %8 = vsyncpa [#allocation3], 0
    %9 = vsyncpa [#allocation6], 0
    %10 = vsyncpa [#allocation4], 0
    // Predicated region
    $region2: #{tpu_custom_call.1} parent=1 // pred_check
      _
    $region3: #{tpu_custom_call.1} parent=1 // pred_check_branch
      %12 = sbr.rel (0) target = $region5
    $region4: #{tpu_custom_call.1} parent=1 // pred_region
      %s14 = ssub.s32 256, 256
      %15 = vsyncadd [#allocation3], %s14
      %s16 = sshll.u32 [#allocation2], 4
      %s17 = int_to_ptr.vmem [resolvable:$true] %s16
      %22 = dma.hbm_to_vmem [thread:$0]  %s0, 256, %s17, [#allocation3], 128, 128, 8
    $region5: #{tpu_custom_call.1} parent=1 // pred_fallthru
      _
    // Predicated region
    $region6: #{tpu_custom_call.1} parent=1 // pred_check
      _
    $region7: #{tpu_custom_call.1} parent=1 // pred_check_branch
      %24 = sbr.rel (0) target = $region9
    $region8: #{tpu_custom_call.1} parent=1 // pred_region
      %s26 = ssub.s32 1024, 1024
      %27 = vsyncadd [#allocation6], %s26
      %s28 = sshll.u32 [#allocation5], 4
      %s29 = int_to_ptr.vmem [resolvable:$true] %s28
      %34 = dma.hbm_to_vmem [thread:$0]  %s1, 1024, %s29, [#allocation6], 256, 256, 16
    $region9: #{tpu_custom_call.1} parent=1 // pred_fallthru
      _
    // Predicated region
    $region10: #{tpu_custom_call.1} parent=1 // pred_check
      _
    $region11: #{tpu_custom_call.1} parent=1 // pred_check_branch
      %36 = sbr.rel (0) target = $region13
    $region12: #{tpu_custom_call.1} parent=1 // pred_region
      %s38 = ssub.s32 2048, 2048
      %39 = vsyncadd [#allocation6], %s38
      %s40 = sshll.u32 [#allocation7], 4
      %s41 = int_to_ptr.vmem [resolvable:$true] %s40
      %46 = dma.hbm_to_vmem [thread:$0]  %s2, 2048, %s41, [#allocation6], 128, 128, 8
    $region13: #{tpu_custom_call.1} parent=1 // pred_fallthru
      _
    // Predicated region
    $region14: #{tpu_custom_call.1} parent=1 // pred_check
      _
    $region15: #{tpu_custom_call.1} parent=1 // pred_check_branch
      %48 = sbr.rel (0) target = $region17
    $region16: #{tpu_custom_call.1} parent=1 // pred_region
      %49 = dma.done [#allocation3], 256
    $region17: #{tpu_custom_call.1} parent=1 // pred_fallthru
      _
    // Predicated region
    $region18: #{tpu_custom_call.1} parent=1 // pred_check
      _
    $region19: #{tpu_custom_call.1} parent=1 // pred_check_branch
      %51 = sbr.rel (0) target = $region21
    $region20: #{tpu_custom_call.1} parent=1 // pred_region
      %52 = dma.done [#allocation6], 1024
    $region21: #{tpu_custom_call.1} parent=1 // pred_fallthru
      _
    // Predicated region
    $region22: #{tpu_custom_call.1} parent=1 // pred_check
      _
    $region23: #{tpu_custom_call.1} parent=1 // pred_check_branch
      %54 = sbr.rel (0) target = $region25
    $region24: #{tpu_custom_call.1} parent=1 // pred_region
      %55 = dma.done [#allocation6], 2048
    $region25: #{tpu_custom_call.1} parent=1 // pred_fallthru
      _
    %v56 = vld [vmem:[#allocation2] sm:$0xff]
    %v57 = vld [vmem:[#allocation2 + $0x8] sm:$0xff]
    %v58 = vld [vmem:[#allocation5] sm:$0xff]
    %v59 = vld [vmem:[#allocation5 + $0x8] sm:$0xff]
    %v60 = vld [vmem:[#allocation5 + $0x10] sm:$0xff]
    %v61 = vld [vmem:[#allocation5 + $0x18] sm:$0xff]
    %v62 = vld [vmem:[#allocation5 + $0x20] sm:$0xff]
    %v63 = vld [vmem:[#allocation5 + $0x28] sm:$0xff]
    %v64 = vld [vmem:[#allocation5 + $0x30] sm:$0xff]
    %v65 = vld [vmem:[#allocation5 + $0x38] sm:$0xff]
    %vm66 = vcmask 261120
    %v68 = vsel %vm66, %v56, 0
    %v71 = vsel %vm66, %v57, 0
    %73 = vmatprep.subr.mxu0 %v59
    %74 = vmatpush1.msra.mxu0 %v58
    %75 = vmatprep.subr.mxu0 %v61
    %76 = vmatpush1.msra.mxu0 %v60
    %77 = vmatprep.subr.mxu0 %v63
    %78 = vmatpush1.msra.mxu0 %v62
    %79 = vmatprep.subr.mxu0 %v65
    %80 = vmatpush1.msra.mxu0 %v64
    %81 = vmatprep.subr.mxu0 0.0
    %82 = vmatpush1.msra.mxu0 0.0
    %83 = vmatprep.subr.mxu0 0.0
    %84 = vmatpush1.msra.mxu0 0.0
    %85 = vmatprep.subr.mxu0 0.0
    %86 = vmatpush1.msra.mxu0 0.0
    %87 = vmatprep.subr.mxu0 0.0
    %88 = vmatpush1.msra.mxu0 0.0
    %89 = vmatprep.subr.mxu0 0.0
    %90 = vmatpush1.msra.mxu0 0.0
    %91 = vmatprep.subr.mxu0 0.0
    %92 = vmatpush1.msra.mxu0 0.0
    %93 = vmatprep.subr.mxu0 0.0
    %94 = vmatpush1.msra.mxu0 0.0
    %95 = vmatprep.subr.mxu0 0.0
    %96 = vmatpush1.msra.mxu0 0.0
    %97 = vmatprep.subr.mxu0 0.0
    %98 = vmatpush1.msra.mxu0 0.0
    %99 = vmatprep.subr.mxu0 0.0
    %100 = vmatpush1.msra.mxu0 0.0
    %101 = vmatprep.subr.mxu0 0.0
    %102 = vmatpush1.msra.mxu0 0.0
    %103 = vmatprep.subr.mxu0 0.0
    %104 = vmatpush1.msra.mxu0 0.0
    %105 = vmatprep.subr.mxu0 0.0
    %106 = vmatpush1.msra.mxu0 0.0
    %107 = vmatprep.subr.mxu0 0.0
    %108 = vmatpush1.msra.mxu0 0.0
    %109 = vmatprep.subr.mxu0 0.0
    %110 = vmatpush1.msra.mxu0 0.0
    %111 = vmatprep.subr.mxu0 0.0
    %112 = vmatpush1.msra.mxu0 0.0
    %113 = vmatprep.subr.mxu0 0.0
    %114 = vmatpush1.msra.mxu0 0.0
    %115 = vmatprep.subr.mxu0 0.0
    %116 = vmatpush1.msra.mxu0 0.0
    %117 = vmatprep.subr.mxu0 0.0
    %118 = vmatpush1.msra.mxu0 0.0
    %119 = vmatprep.subr.mxu0 0.0
    %120 = vmatpush1.msra.mxu0 0.0
    %121 = vmatprep.subr.mxu0 0.0
    %122 = vmatpush1.msra.mxu0 0.0
    %123 = vmatprep.subr.mxu0 0.0
    %124 = vmatpush1.msra.mxu0 0.0
    %125 = vmatprep.subr.mxu0 0.0
    %126 = vmatpush1.msra.mxu0 0.0
    %127 = vmatprep.subr.mxu0 0.0
    %128 = vmatpush1.msra.mxu0 0.0
    %129 = vmatprep.subr.mxu0 0.0
    %130 = vmatpush1.msra.mxu0 0.0
    %131 = vmatprep.subr.mxu0 0.0
    %132 = vmatpush1.msra.mxu0 0.0
    %133 = vmatprep.subr.mxu0 0.0
    %134 = vmatpush1.msra.mxu0 0.0
    %135 = vmatprep.subr.mxu0 0.0
    %136 = vmatpush1.msra.mxu0 0.0
    %137 = vmatprep.mubr.f32.mxu0 0.0
    %138 = vmatmul.mubr.f32.gmra.mrb[0].mxu0 %v68
    %v139 = vpop.f32.mrb[0].mxu0
    %v140 = vadd.f32 0.0, %v139
    %v141 = vpop.f32.mrb[0].mxu0
    %v142 = vadd.f32 0.0, %v141
    %143 = vmatprep.mubr.f32.mxu0 0.0
    %144 = vmatmul.mubr.f32.gmra.mrb[0].mxu0 %v71
    %v145 = vpop.f32.mrb[0].mxu0
    %v146 = vadd.f32 0.0, %v145
    %v147 = vpop.f32.mrb[0].mxu0
    %v148 = vadd.f32 0.0, %v147
    %149 = vdwg.mxu0
    %v150 = vxor.u32 %v140, 2147483648
    %v151 = vxor.u32 %v146, 2147483648
    %v152 = vmul.f32 %v150, 1.442695
    %v153 = vpow.pop %v152
    %v154 = vmul.f32 %v151, 1.442695
    %v155 = vpow.pop %v154
    %v156 = vadd.f32 %v153, 1.0
    %v157 = vadd.f32 %v155, 1.0
    %v158 = vrcp.pop %v156
    %v159 = vmul.f32 1.0, %v158
    %v160 = vrcp.pop %v157
    %v161 = vmul.f32 1.0, %v160
    %v162 = vmul.f32 %v140, %v159
    %v163 = vmul.f32 %v146, %v161
    %v164 = vmul.f32 %v162, %v142
    %v165 = vmul.f32 %v163, %v148
    %v166 = vld [vmem:[#allocation7] sm:$0xff]
    %v167 = vld [vmem:[#allocation7 + $0x8] sm:$0xff]
    %v168 = vld [vmem:[#allocation7 + $0x10] sm:$0xff]
    %v169 = vld [vmem:[#allocation7 + $0x18] sm:$0xff]
    %v170 = vld [vmem:[#allocation7 + $0x20] sm:$0xff]
    %v171 = vld [vmem:[#allocation7 + $0x28] sm:$0xff]
    %v172 = vld [vmem:[#allocation7 + $0x30] sm:$0xff]
    %v173 = vld [vmem:[#allocation7 + $0x38] sm:$0xff]
    %v174 = vld [vmem:[#allocation7 + $0x40] sm:$0xff]
    %v175 = vld [vmem:[#allocation7 + $0x48] sm:$0xff]
    %v176 = vld [vmem:[#allocation7 + $0x50] sm:$0xff]
    %v177 = vld [vmem:[#allocation7 + $0x58] sm:$0xff]
    %v178 = vld [vmem:[#allocation7 + $0x60] sm:$0xff]
    %v179 = vld [vmem:[#allocation7 + $0x68] sm:$0xff]
    %v180 = vld [vmem:[#allocation7 + $0x70] sm:$0xff]
    %v181 = vld [vmem:[#allocation7 + $0x78] sm:$0xff]
    %182 = vmatprep.subr.mxu0 0.0
    %183 = vmatpush1.msra.mxu0 %v166
    %184 = vmatprep.subr.mxu0 0.0
    %185 = vmatpush1.msra.mxu0 %v167
    %186 = vmatprep.subr.mxu0 0.0
    %187 = vmatpush1.msra.mxu0 %v168
    %188 = vmatprep.subr.mxu0 0.0
    %189 = vmatpush1.msra.mxu0 %v169
    %190 = vmatprep.subr.mxu0 0.0
    %191 = vmatpush1.msra.mxu0 %v170
    %192 = vmatprep.subr.mxu0 0.0
    %193 = vmatpush1.msra.mxu0 %v171
    %194 = vmatprep.subr.mxu0 0.0
    %195 = vmatpush1.msra.mxu0 %v172
    %196 = vmatprep.subr.mxu0 0.0
    %197 = vmatpush1.msra.mxu0 %v173
    %198 = vmatprep.subr.mxu0 0.0
    %199 = vmatpush1.msra.mxu0 %v174
    %200 = vmatprep.subr.mxu0 0.0
    %201 = vmatpush1.msra.mxu0 %v175
    %202 = vmatprep.subr.mxu0 0.0
    %203 = vmatpush1.msra.mxu0 %v176
    %204 = vmatprep.subr.mxu0 0.0
    %205 = vmatpush1.msra.mxu0 %v177
    %206 = vmatprep.subr.mxu0 0.0
    %207 = vmatpush1.msra.mxu0 %v178
    %208 = vmatprep.subr.mxu0 0.0
    %209 = vmatpush1.msra.mxu0 %v179
    %210 = vmatprep.subr.mxu0 0.0
    %211 = vmatpush1.msra.mxu0 %v180
    %212 = vmatprep.subr.mxu0 0.0
    %213 = vmatpush1.msra.mxu0 %v181
    %214 = vmatprep.subr.mxu0 0.0
    %215 = vmatpush1.msra.mxu0 0.0
    %216 = vmatprep.subr.mxu0 0.0
    %217 = vmatpush1.msra.mxu0 0.0
    %218 = vmatprep.subr.mxu0 0.0
    %219 = vmatpush1.msra.mxu0 0.0
    %220 = vmatprep.subr.mxu0 0.0
    %221 = vmatpush1.msra.mxu0 0.0
    %222 = vmatprep.subr.mxu0 0.0
    %223 = vmatpush1.msra.mxu0 0.0
    %224 = vmatprep.subr.mxu0 0.0
    %225 = vmatpush1.msra.mxu0 0.0
    %226 = vmatprep.subr.mxu0 0.0
    %227 = vmatpush1.msra.mxu0 0.0
    %228 = vmatprep.subr.mxu0 0.0
    %229 = vmatpush1.msra.mxu0 0.0
    %230 = vmatprep.subr.mxu0 0.0
    %231 = vmatpush1.msra.mxu0 0.0
    %232 = vmatprep.subr.mxu0 0.0
    %233 = vmatpush1.msra.mxu0 0.0
    %234 = vmatprep.subr.mxu0 0.0
    %235 = vmatpush1.msra.mxu0 0.0
    %236 = vmatprep.subr.mxu0 0.0
    %237 = vmatpush1.msra.mxu0 0.0
    %238 = vmatprep.subr.mxu0 0.0
    %239 = vmatpush1.msra.mxu0 0.0
    %240 = vmatprep.subr.mxu0 0.0
    %241 = vmatpush1.msra.mxu0 0.0
    %242 = vmatprep.subr.mxu0 0.0
    %243 = vmatpush1.msra.mxu0 0.0
    %244 = vmatprep.subr.mxu0 0.0
    %245 = vmatpush1.msra.mxu0 0.0
    %246 = vmatprep.mubr.f32.mxu0 0.0
    %247 = vmatmul.mubr.f32.gmra.mrb[0].mxu0 %v164
    %v248 = vpop.f32.mrb[0].mxu0
    %v249 = vadd.f32 0.0, %v248
    %v250 = vpop.f32.mrb[0].mxu0
    %251 = vmatprep.mubr.f32.mxu0 0.0
    %252 = vmatmul.mubr.f32.gmra.mrb[0].mxu0 %v165
    %v253 = vpop.f32.mrb[0].mxu0
    %v254 = vadd.f32 0.0, %v253
    %v255 = vpop.f32.mrb[0].mxu0
    %256 = vdwg.mxu0
    %257 = vst [vmem:[#allocation8] sm:$0xff] %v249
    %258 = vst [vmem:[#allocation8 + $0x8] sm:$0xff] %v254
    // Predicated region
    $region26: #{tpu_custom_call.1} parent=1 // pred_check
      _
    $region27: #{tpu_custom_call.1} parent=1 // pred_check_branch
      %260 = sbr.rel (0) target = $region29
    $region28: #{tpu_custom_call.1} parent=1 // pred_region
      %s262 = ssub.s32 256, 256
      %263 = vsyncadd [#allocation4], %s262
      %s264 = sshll.u32 [#allocation8], 4
      %s265 = int_to_ptr.vmem [resolvable:$true] %s264
      %270 = dma.vmem_to_hbm [thread:$0]  %s265, 256, %s3, [#allocation4], 128, 128, 8
    $region29: #{tpu_custom_call.1} parent=1 // pred_fallthru
      _
    // Predicated region
    $region30: #{tpu_custom_call.1} parent=1 // pred_check
      _
    $region31: #{tpu_custom_call.1} parent=1 // pred_check_branch
      %272 = sbr.rel (0) target = $region33
    $region32: #{tpu_custom_call.1} parent=1 // pred_region
      %273 = dma.done [#allocation4], 256
    $region33: #{tpu_custom_call.1} parent=1 // pred_fallthru
      _
    %274 = vsyncpa [#allocation3], 1
    %275 = vsyncpa [#allocation6], 1
    %276 = vsyncpa [#allocation4], 1

// kernel: tpu_custom_call.1
$region0: #{tpu_custom_call.1}
  #allocation0 [shape = 'u32[]', space=smem, size = 0x4, offset = 0x4, fixed_abs, tag = 'smem constant byte address 0x4 - core index']
  #allocation1 [shape = 'u32[144,128]{1,0:T(1,128)}', space=vmem, size = 0x12000, scoped, tag = 'internal scratch']
  %s0 = inlined_call_operand.hbm [shape: f32[16,32], index: 0, kind: input, shape index: {}]
  %s1 = inlined_call_operand.hbm [shape: f32[32,256], index: 1, kind: input, shape index: {}]
  %s2 = inlined_call_operand.hbm [shape: f32[128,128], index: 2, kind: input, shape index: {}]
  %s3 = inlined_call_operand.hbm [shape: f32[16,128], index: 3, kind: output, shape index: {}]
  %s4 = sld [smem:[#allocation0]]
  $region34: #{tpu_custom_call.1} parent=0
    _
  %s6 = ssub.s32 1, %s4
  %s7 = scalar_select 0, %s6, %s4
  $region1: #{tpu_custom_call.1} parent=0
    #allocation2 [shape = 'u8[8192]{0}', space=vmem, size = 0x2000, scoped, tag = 'input window, operand 0, single buffered']
    #allocation3 [shape = 's32[1]{0}', space=sflag, size = 0x4, scoped, tag = 'scoped memory for tpu_custom_call.1']
    #allocation4 [shape = 's32[1]{0}', space=sflag, size = 0x4, scoped, tag = 'scoped memory for tpu_custom_call.1']
    #allocation5 [shape = 'u8[32768]{0}', space=vmem, size = 0x8000, scoped, tag = 'input window, operand 1, single buffered']
    #allocation6 [shape = 's32[1]{0}', space=sflag, size = 0x4, scoped, tag = 'scoped memory for tpu_custom_call.1']
    #allocation7 [shape = 'u8[65536]{0}', space=vmem, size = 0x10000, scoped, tag = 'input window, operand 2, single buffered']
    #allocation8 [shape = 'u8[8192]{0}', space=vmem, size = 0x2000, scoped, tag = 'output window, operand 0, single buffered']
    %8 = vsyncpa [#allocation3], 0
    %9 = vsyncpa [#allocation6], 0
    %10 = vsyncpa [#allocation4], 0
    // Predicated region
    $region2: #{tpu_custom_call.1} parent=1 // pred_check
      _
    $region3: #{tpu_custom_call.1} parent=1 // pred_check_branch
      %12 = sbr.rel (0) target = $region5
    $region4: #{tpu_custom_call.1} parent=1 // pred_region
      %s14 = ssub.s32 256, 256
      %15 = vsyncadd [#allocation3], %s14
      %s16 = sshll.u32 [#allocation2], 4
      %s17 = int_to_ptr.vmem [resolvable:$true] %s16
      %22 = dma.hbm_to_vmem [thread:$0]  %s0, 256, %s17, [#allocation3], 128, 128, 8
    $region5: #{tpu_custom_call.1} parent=1 // pred_fallthru
      _
    // Predicated region
    $region6: #{tpu_custom_call.1} parent=1 // pred_check
      _
    $region7: #{tpu_custom_call.1} parent=1 // pred_check_branch
      %24 = sbr.rel (0) target = $region9
    $region8: #{tpu_custom_call.1} parent=1 // pred_region
      %s26 = ssub.s32 1024, 1024
      %27 = vsyncadd [#allocation6], %s26
      %s28 = sshll.u32 [#allocation5], 4
      %s29 = int_to_ptr.vmem [resolvable:$true] %s28
      %34 = dma.hbm_to_vmem [thread:$0]  %s1, 1024, %s29, [#allocation6], 256, 256, 16
    $region9: #{tpu_custom_call.1} parent=1 // pred_fallthru
      _
    // Predicated region
    $region10: #{tpu_custom_call.1} parent=1 // pred_check
      _
    $region11: #{tpu_custom_call.1} parent=1 // pred_check_branch
      %36 = sbr.rel (0) target = $region13
    $region12: #{tpu_custom_call.1} parent=1 // pred_region
      %s38 = ssub.s32 2048, 2048
      %39 = vsyncadd [#allocation6], %s38
      %s40 = sshll.u32 [#allocation7], 4
      %s41 = int_to_ptr.vmem [resolvable:$true] %s40
      %46 = dma.hbm_to_vmem [thread:$0]  %s2, 2048, %s41, [#allocation6], 128, 128, 8
    $region13: #{tpu_custom_call.1} parent=1 // pred_fallthru
      _
    // Predicated region
    $region14: #{tpu_custom_call.1} parent=1 // pred_check
      _
    $region15: #{tpu_custom_call.1} parent=1 // pred_check_branch
      %48 = sbr.rel (0) target = $region17
    $region16: #{tpu_custom_call.1} parent=1 // pred_region
      %49 = dma.done [#allocation3], 256
    $region17: #{tpu_custom_call.1} parent=1 // pred_fallthru
      _
    // Predicated region
    $region18: #{tpu_custom_call.1} parent=1 // pred_check
      _
    $region19: #{tpu_custom_call.1} parent=1 // pred_check_branch
      %51 = sbr.rel (0) target = $region21
    $region20: #{tpu_custom_call.1} parent=1 // pred_region
      %52 = dma.done [#allocation6], 1024
    $region21: #{tpu_custom_call.1} parent=1 // pred_fallthru
      _
    // Predicated region
    $region22: #{tpu_custom_call.1} parent=1 // pred_check
      _
    $region23: #{tpu_custom_call.1} parent=1 // pred_check_branch
      %54 = sbr.rel (0) target = $region25
    $region24: #{tpu_custom_call.1} parent=1 // pred_region
      %55 = dma.done [#allocation6], 2048
    $region25: #{tpu_custom_call.1} parent=1 // pred_fallthru
      _
    %v56 = vld [vmem:[#allocation2] sm:$0xff]
    %v57 = vld [vmem:[#allocation2 + $0x8] sm:$0xff]
    %v58 = vld [vmem:[#allocation5] sm:$0xff]
    %v59 = vld [vmem:[#allocation5 + $0x8] sm:$0xff]
    %v60 = vld [vmem:[#allocation5 + $0x10] sm:$0xff]
    %v61 = vld [vmem:[#allocation5 + $0x18] sm:$0xff]
    %v62 = vld [vmem:[#allocation5 + $0x20] sm:$0xff]
    %v63 = vld [vmem:[#allocation5 + $0x28] sm:$0xff]
    %v64 = vld [vmem:[#allocation5 + $0x30] sm:$0xff]
    %v65 = vld [vmem:[#allocation5 + $0x38] sm:$0xff]
    %vm66 = vcmask 261120
    %v68 = vsel %vm66, %v56, 0
    %v71 = vsel %vm66, %v57, 0
    %73 = vmatprep.subr.mxu0 %v59
    %74 = vmatpush1.msra.mxu0 %v58
    %75 = vmatprep.subr.mxu0 %v61
    %76 = vmatpush1.msra.mxu0 %v60
    %77 = vmatprep.subr.mxu0 %v63
    %78 = vmatpush1.msra.mxu0 %v62
    %79 = vmatprep.subr.mxu0 %v65
    %80 = vmatpush1.msra.mxu0 %v64
    %81 = vmatprep.subr.mxu0 0.0
    %82 = vmatpush1.msra.mxu0 0.0
    %83 = vmatprep.subr.mxu0 0.0
    %84 = vmatpush1.msra.mxu0 0.0
    %85 = vmatprep.subr.mxu0 0.0
    %86 = vmatpush1.msra.mxu0 0.0
    %87 = vmatprep.subr.mxu0 0.0
    %88 = vmatpush1.msra.mxu0 0.0
    %89 = vmatprep.subr.mxu0 0.0
    %90 = vmatpush1.msra.mxu0 0.0
    %91 = vmatprep.subr.mxu0 0.0
    %92 = vmatpush1.msra.mxu0 0.0
    %93 = vmatprep.subr.mxu0 0.0
    %94 = vmatpush1.msra.mxu0 0.0
    %95 = vmatprep.subr.mxu0 0.0
    %96 = vmatpush1.msra.mxu0 0.0
    %97 = vmatprep.subr.mxu0 0.0
    %98 = vmatpush1.msra.mxu0 0.0
    %99 = vmatprep.subr.mxu0 0.0
    %100 = vmatpush1.msra.mxu0 0.0
    %101 = vmatprep.subr.mxu0 0.0
    %102 = vmatpush1.msra.mxu0 0.0
    %103 = vmatprep.subr.mxu0 0.0
    %104 = vmatpush1.msra.mxu0 0.0
    %105 = vmatprep.subr.mxu0 0.0
    %106 = vmatpush1.msra.mxu0 0.0
    %107 = vmatprep.subr.mxu0 0.0
    %108 = vmatpush1.msra.mxu0 0.0
    %109 = vmatprep.subr.mxu0 0.0
    %110 = vmatpush1.msra.mxu0 0.0
    %111 = vmatprep.subr.mxu0 0.0
    %112 = vmatpush1.msra.mxu0 0.0
    %113 = vmatprep.subr.mxu0 0.0
    %114 = vmatpush1.msra.mxu0 0.0
    %115 = vmatprep.subr.mxu0 0.0
    %116 = vmatpush1.msra.mxu0 0.0
    %117 = vmatprep.subr.mxu0 0.0
    %118 = vmatpush1.msra.mxu0 0.0
    %119 = vmatprep.subr.mxu0 0.0
    %120 = vmatpush1.msra.mxu0 0.0
    %121 = vmatprep.subr.mxu0 0.0
    %122 = vmatpush1.msra.mxu0 0.0
    %123 = vmatprep.subr.mxu0 0.0
    %124 = vmatpush1.msra.mxu0 0.0
    %125 = vmatprep.subr.mxu0 0.0
    %126 = vmatpush1.msra.mxu0 0.0
    %127 = vmatprep.subr.mxu0 0.0
    %128 = vmatpush1.msra.mxu0 0.0
    %129 = vmatprep.subr.mxu0 0.0
    %130 = vmatpush1.msra.mxu0 0.0
    %131 = vmatprep.subr.mxu0 0.0
    %132 = vmatpush1.msra.mxu0 0.0
    %133 = vmatprep.subr.mxu0 0.0
    %134 = vmatpush1.msra.mxu0 0.0
    %135 = vmatprep.subr.mxu0 0.0
    %136 = vmatpush1.msra.mxu0 0.0
    %137 = vmatprep.mubr.f32.mxu0 0.0
    %138 = vmatmul.mubr.f32.gmra.mrb[0].mxu0 %v68
    %v139 = vpop.f32.mrb[0].mxu0
    %v140 = vadd.f32 0.0, %v139
    %v141 = vpop.f32.mrb[0].mxu0
    %v142 = vadd.f32 0.0, %v141
    %143 = vmatprep.mubr.f32.mxu0 0.0
    %144 = vmatmul.mubr.f32.gmra.mrb[0].mxu0 %v71
    %v145 = vpop.f32.mrb[0].mxu0
    %v146 = vadd.f32 0.0, %v145
    %v147 = vpop.f32.mrb[0].mxu0
    %v148 = vadd.f32 0.0, %v147
    %149 = vdwg.mxu0
    %v150 = vxor.u32 %v140, 2147483648
    %v151 = vxor.u32 %v146, 2147483648
    %v152 = vmul.f32 %v150, 1.442695
    %v153 = vpow.pop %v152
    %v154 = vmul.f32 %v151, 1.442695
    %v155 = vpow.pop %v154
    %v156 = vadd.f32 %v153, 1.0
    %v157 = vadd.f32 %v155, 1.0
    %v158 = vrcp.pop %v156
    %v159 = vmul.f32 1.0, %v158
    %v160 = vrcp.pop %v157
    %v161 = vmul.f32 1.0, %v160
    %v162 = vmul.f32 %v140, %v159
    %v163 = vmul.f32 %v146, %v161
    %v164 = vmul.f32 %v162, %v142
    %v165 = vmul.f32 %v163, %v148
    %v166 = vld [vmem:[#allocation7] sm:$0xff]
    %v167 = vld [vmem:[#allocation7 + $0x8] sm:$0xff]
    %v168 = vld [vmem:[#allocation7 + $0x10] sm:$0xff]
    %v169 = vld [vmem:[#allocation7 + $0x18] sm:$0xff]
    %v170 = vld [vmem:[#allocation7 + $0x20] sm:$0xff]
    %v171 = vld [vmem:[#allocation7 + $0x28] sm:$0xff]
    %v172 = vld [vmem:[#allocation7 + $0x30] sm:$0xff]
    %v173 = vld [vmem:[#allocation7 + $0x38] sm:$0xff]
    %v174 = vld [vmem:[#allocation7 + $0x40] sm:$0xff]
    %v175 = vld [vmem:[#allocation7 + $0x48] sm:$0xff]
    %v176 = vld [vmem:[#allocation7 + $0x50] sm:$0xff]
    %v177 = vld [vmem:[#allocation7 + $0x58] sm:$0xff]
    %v178 = vld [vmem:[#allocation7 + $0x60] sm:$0xff]
    %v179 = vld [vmem:[#allocation7 + $0x68] sm:$0xff]
    %v180 = vld [vmem:[#allocation7 + $0x70] sm:$0xff]
    %v181 = vld [vmem:[#allocation7 + $0x78] sm:$0xff]
    %182 = vmatprep.subr.mxu0 0.0
    %183 = vmatpush1.msra.mxu0 %v166
    %184 = vmatprep.subr.mxu0 0.0
    %185 = vmatpush1.msra.mxu0 %v167
    %186 = vmatprep.subr.mxu0 0.0
    %187 = vmatpush1.msra.mxu0 %v168
    %188 = vmatprep.subr.mxu0 0.0
    %189 = vmatpush1.msra.mxu0 %v169
    %190 = vmatprep.subr.mxu0 0.0
    %191 = vmatpush1.msra.mxu0 %v170
    %192 = vmatprep.subr.mxu0 0.0
    %193 = vmatpush1.msra.mxu0 %v171
    %194 = vmatprep.subr.mxu0 0.0
    %195 = vmatpush1.msra.mxu0 %v172
    %196 = vmatprep.subr.mxu0 0.0
    %197 = vmatpush1.msra.mxu0 %v173
    %198 = vmatprep.subr.mxu0 0.0
    %199 = vmatpush1.msra.mxu0 %v174
    %200 = vmatprep.subr.mxu0 0.0
    %201 = vmatpush1.msra.mxu0 %v175
    %202 = vmatprep.subr.mxu0 0.0
    %203 = vmatpush1.msra.mxu0 %v176
    %204 = vmatprep.subr.mxu0 0.0
    %205 = vmatpush1.msra.mxu0 %v177
    %206 = vmatprep.subr.mxu0 0.0
    %207 = vmatpush1.msra.mxu0 %v178
    %208 = vmatprep.subr.mxu0 0.0
    %209 = vmatpush1.msra.mxu0 %v179
    %210 = vmatprep.subr.mxu0 0.0
    %211 = vmatpush1.msra.mxu0 %v180
    %212 = vmatprep.subr.mxu0 0.0
    %213 = vmatpush1.msra.mxu0 %v181
    %214 = vmatprep.subr.mxu0 0.0
    %215 = vmatpush1.msra.mxu0 0.0
    %216 = vmatprep.subr.mxu0 0.0
    %217 = vmatpush1.msra.mxu0 0.0
    %218 = vmatprep.subr.mxu0 0.0
    %219 = vmatpush1.msra.mxu0 0.0
    %220 = vmatprep.subr.mxu0 0.0
    %221 = vmatpush1.msra.mxu0 0.0
    %222 = vmatprep.subr.mxu0 0.0
    %223 = vmatpush1.msra.mxu0 0.0
    %224 = vmatprep.subr.mxu0 0.0
    %225 = vmatpush1.msra.mxu0 0.0
    %226 = vmatprep.subr.mxu0 0.0
    %227 = vmatpush1.msra.mxu0 0.0
    %228 = vmatprep.subr.mxu0 0.0
    %229 = vmatpush1.msra.mxu0 0.0
    %230 = vmatprep.subr.mxu0 0.0
    %231 = vmatpush1.msra.mxu0 0.0
    %232 = vmatprep.subr.mxu0 0.0
    %233 = vmatpush1.msra.mxu0 0.0
    %234 = vmatprep.subr.mxu0 0.0
    %235 = vmatpush1.msra.mxu0 0.0
    %236 = vmatprep.subr.mxu0 0.0
    %237 = vmatpush1.msra.mxu0 0.0
    %238 = vmatprep.subr.mxu0 0.0
    %239 = vmatpush1.msra.mxu0 0.0
    %240 = vmatprep.subr.mxu0 0.0
    %241 = vmatpush1.msra.mxu0 0.0
    %242 = vmatprep.subr.mxu0 0.0
    %243 = vmatpush1.msra.mxu0 0.0
    %244 = vmatprep.subr.mxu0 0.0
    %245 = vmatpush1.msra.mxu0 0.0
    %246 = vmatprep.mubr.f32.mxu0 0.0
    %247 = vmatmul.mubr.f32.gmra.mrb[0].mxu0 %v164
    %v248 = vpop.f32.mrb[0].mxu0
    %v249 = vadd.f32 0.0, %v248
    %v250 = vpop.f32.mrb[0].mxu0
    %251 = vmatprep.mubr.f32.mxu0 0.0
    %252 = vmatmul.mubr.f32.gmra.mrb[0].mxu0 %v165
    %v253 = vpop.f32.mrb[0].mxu0
    %v254 = vadd.f32 0.0, %v253
    %v255 = vpop.f32.mrb[0].mxu0
    %256 = vdwg.mxu0
    %257 = vst [vmem:[#allocation8] sm:$0xff] %v249
    %258 = vst [vmem:[#allocation8 + $0x8] sm:$0xff] %v254
    // Predicated region
    $region26: #{tpu_custom_call.1} parent=1 // pred_check
      _
    $region27: #{tpu_custom_call.1} parent=1 // pred_check_branch
      %260 = sbr.rel (0) target = $region29
    $region28: #{tpu_custom_call.1} parent=1 // pred_region
      %s262 = ssub.s32 256, 256
      %263 = vsyncadd [#allocation4], %s262
      %s264 = sshll.u32 [#allocation8], 4
      %s265 = int_to_ptr.vmem [resolvable:$true] %s264
      %270 = dma.vmem_to_hbm [thread:$0]  %s265, 256, %s3, [#allocation4], 128, 128, 8
    $region29: #{tpu_custom_call.1} parent=1 // pred_fallthru
      _
    // Predicated region
    $region30: #{tpu_custom_call.1} parent=1 // pred_check
      _
    $region31: #{tpu_custom_call.1} parent=1 // pred_check_branch
      %272 = sbr.rel (0) target = $region33
    $region32: #{tpu_custom_call.1} parent=1 // pred_region
      %273 = dma.done [#allocation4], 256
    $region33: #{tpu_custom_call.1} parent=1 // pred_fallthru
      _
    %274 = vsyncpa [#allocation3], 1
    %275 = vsyncpa [#allocation6], 1
    %276 = vsyncpa [#allocation4], 1

</llo_original>
